<compile_context>
chip_gen: v6e
topology: v6e:2x2x1
jax: 0.10.0
libtpu: 0.0.40
codegen_flags: <defaults>
</compile_context>

<pallas_src>
import functools
import math

import jax
import jax.numpy as jnp
from jax import lax
from jax.experimental import pallas as pl
from jax.experimental.pallas import tpu as pltpu

# Standard torchvision VGG16 "features" config (conv3x3+ReLU, 'M' = maxpool 2x2/2).
VGG16_CFG = [64, 64, "M", 128, 128, "M", 256, 256, 256, "M",
             512, 512, 512, "M", 512, 512, 512, "M"]

_MiB = 1024 * 1024


def _block_structure():
    """List of conv blocks; each block is a list of (Cin, Cout) for its convs."""
    blocks, cur, cin = [], [], 3
    for v in VGG16_CFG:
        if v == "M":
            blocks.append(cur)
            cur = []
        else:
            cur.append((cin, v))
            cin = v
    return blocks


def _padded_bytes(shape, dtype):
    """Rough VMEM footprint of an array, including (sublane, lane) tile padding."""
    itemsize = jnp.dtype(dtype).itemsize
    s = list(shape)
    if not s:
        return max(itemsize, 4)
    sub = {4: 8, 2: 16, 1: 32}.get(itemsize, 8)
    s[-1] = -(-s[-1] // 128) * 128
    if len(s) >= 2:
        s[-2] = -(-s[-2] // sub) * sub
    return math.prod(s) * itemsize


@functools.lru_cache(maxsize=None)
def _roll_shifts_like_jnp():
    """One-time hardware probe pinning pltpu.roll's shift convention.

    Returns True iff pltpu.roll(x, 1, axis=0)[i] == x[i - 1] (jnp.roll convention).  The
    conv code adapts to either convention so the 3x3 taps can never be silently mirrored.
    """
    def probe(x_ref, o_ref):
        o_ref[...] = pltpu.roll(x_ref[...], shift=1, axis=0)

    x = jnp.arange(8 * 128, dtype=jnp.float32).reshape(8, 128)
    y = pl.pallas_call(probe, out_shape=jax.ShapeDtypeStruct((8, 128), jnp.float32))(x)
    return bool(jnp.array_equal(y, jnp.roll(x, 1, axis=0)))


def _roll_rows(x, k, like_jnp):
    """result[i] = x[(i - k) % N]  (jnp.roll convention); k is a static Python int."""
    n = x.shape[0]
    amt = (k if like_jnp else -k) % n
    return pltpu.roll(x, shift=amt, axis=0)


# ---------------------- whole-plane conv 3x3 (pad=1) + bias + ReLU ----------------------
def _conv3x3_relu(x, wd_ref, b_ref, dst_ref, *, H, W, like_jnp):
    """3x3 'same' conv + bias + ReLU over the whole flattened (batch, H, W) plane.

    x:       (N, Cin) bf16 value, N = B*H*W, rows ordered (b, h, w).
    wd_ref:  (3, 3*Cin, Cout) bf16 -- dx-indexed, rows ordered (dy-major, cin-minor).
    b_ref:   (1, Cout) f32.
    dst_ref: (N, Cout) VMEM ref (bf16 or f32).

    The three dy taps are fused into a single K=3*Cin contraction (3 MXU dots per conv);
    zero padding is realized with flat-row rolls + boundary masks, so out-of-image rows
    contribute nothing and roll wraparound (incl. across the batch) is masked away.
    """
    x = x.astype(jnp.bfloat16)
    N, _ = x.shape
    row = lax.broadcasted_iota(jnp.int32, (N, 1), 0)
    h_idx = (row // W) % H
    w_idx = row % W

    up = jnp.where(h_idx > 0, _roll_rows(x, W, like_jnp), 0)          # x[b, h-1, w]
    down = jnp.where(h_idx < H - 1, _roll_rows(x, -W, like_jnp), 0)   # x[b, h+1, w]
    x3 = jnp.concatenate([up, x, down], axis=-1)                      # (N, 3*Cin)

    acc = jnp.dot(x3, wd_ref[1], preferred_element_type=jnp.float32)  # dx = 1 (center)
    left = jnp.where(w_idx > 0, _roll_rows(x3, 1, like_jnp), 0)       # x3[b, h, w-1]
    acc = acc + jnp.dot(left, wd_ref[0], preferred_element_type=jnp.float32)
    right = jnp.where(w_idx < W - 1, _roll_rows(x3, -1, like_jnp), 0)  # x3[b, h, w+1]
    acc = acc + jnp.dot(right, wd_ref[2], preferred_element_type=jnp.float32)

    dst_ref[...] = jnp.maximum(acc + b_ref[...], 0.0).astype(dst_ref.dtype)


# ------------------------------- 2x2 stride-2 maxpool -----------------------------------
def _maxpool_2x2(src_ref, tmp_ref, dst_ref, *, B, H, W):
    """src_ref: (B*H*W, C) f32, tmp_ref: (B*H*(W//2), C) f32, dst_ref: (B*(H//2)*(W//2), C)."""
    N = B * H * W
    Ho, Wo = H // 2, W // 2
    # Horizontal: adjacent w pairs are adjacent flat rows -> two strided reads.
    tmp_ref[...] = jnp.maximum(src_ref[pl.ds(0, N // 2, 2), :],
                               src_ref[pl.ds(1, N // 2, 2), :])
    # Vertical: pair adjacent h row-groups (Wo contiguous rows each) per image.
    for b in range(B):
        for ho in range(Ho):
            r0 = tmp_ref[pl.ds((b * H + 2 * ho) * Wo, Wo), :]
            r1 = tmp_ref[pl.ds((b * H + 2 * ho + 1) * Wo, Wo), :]
            dst_ref[pl.ds((b * Ho + ho) * Wo, Wo), :] = \
                jnp.maximum(r0, r1).astype(dst_ref.dtype)


# --------------- head: spatial mean -> Linear/ReLU stack -> log_softmax -----------------
def _mlp_head(pool_ref, fc_refs, out_ref, *, B, S):
    feats = []
    for b in range(B):
        v = pool_ref[pl.ds(b * S, S), :].astype(jnp.float32)
        feats.append(jnp.sum(v, axis=0, keepdims=True) * (1.0 / S))   # torch.mean(dim=[2,3])
    h = jnp.concatenate(feats, axis=0)                                 # (B, 512) f32
    n_fc = len(fc_refs) // 2
    for j in range(n_fc):
        w_ref, b_ref = fc_refs[2 * j], fc_refs[2 * j + 1]
        h = jnp.dot(h.astype(jnp.bfloat16), w_ref[...],
                    preferred_element_type=jnp.float32) + b_ref[...]
        if j < n_fc - 1:
            h = jnp.maximum(h, 0.0)
    m = jnp.max(h, axis=1, keepdims=True)
    z = h - m
    out_ref[...] = z - jnp.log(jnp.sum(jnp.exp(z), axis=1, keepdims=True))


# ------------------------------- fused full-network kernel ------------------------------
def _make_kernel(B, H0, W0, blocks, n_fc, stream_ids, like_jnp):
    nconv = sum(len(b) for b in blocks)
    n_stream = len(stream_ids)
    slot_of = {ci: s for s, ci in enumerate(stream_ids)}

    def kernel(*refs):
        i = 0
        x_ref = refs[i]; i += 1
        wd_refs = refs[i:i + nconv]; i += nconv
        cb_refs = refs[i:i + nconv]; i += nconv
        fc_refs = refs[i:i + 2 * n_fc]; i += 2 * n_fc
        out_ref = refs[i]; i += 1
        wbufs = refs[i:i + n_stream]; i += n_stream
        dma_sem = refs[i]; i += 1
        act_refs = refs[i:]

        # Kick off the HBM->VMEM prefetch of the deep-block conv weights (~29 MB, the bulk
        # of all forward HBM traffic) so the copies overlap blocks 1-2 compute.
        for s, ci in enumerate(stream_ids):
            pltpu.make_async_copy(wd_refs[ci], wbufs[s], dma_sem.at[s]).start()

        H, W = H0, W0
        src = x_ref
        ci = 0
        ai = 0
        for blk in blocks:
            for _ in blk:
                dst = act_refs[ai]; ai += 1
                if ci in slot_of:
                    s = slot_of[ci]
                    pltpu.make_async_copy(wd_refs[ci], wbufs[s], dma_sem.at[s]).wait()
                    w_ref = wbufs[s]
                else:
                    w_ref = wd_refs[ci]
                if ci == 0:
                    # First conv: the 3x3x3 im2col (K=27) was built host-side, so it is a
                    # single plain matmul (Cin=3 is <1% of total FLOPs).
                    v = jnp.dot(src[...], w_ref[...], preferred_element_type=jnp.float32)
                    dst[...] = jnp.maximum(v + cb_refs[ci][...], 0.0).astype(dst.dtype)
                else:
                    _conv3x3_relu(src[...], w_ref, cb_refs[ci], dst,
                                  H=H, W=W, like_jnp=like_jnp)
                src = dst
                ci += 1
            tmp = act_refs[ai]; ai += 1
            pooled = act_refs[ai]; ai += 1
            _maxpool_2x2(src, tmp, pooled, B=B, H=H, W=W)
            src = pooled
            H, W = H // 2, W // 2

        _mlp_head(src, fc_refs, out_ref, B=B, S=H * W)

    return kernel


def _im2col_3x3(x_img):
    """(B, H, W, C) -> (B*H*W, 9*C) patches for a 3x3 'same' conv; rows tap-major (dy, dx)."""
    B, H, W, C = x_img.shape
    xp = jnp.pad(x_img, ((0, 0), (1, 1), (1, 1), (0, 0)))
    cols = [xp[:, dy:dy + H, dx:dx + W, :] for dy in range(3) for dx in range(3)]
    return jnp.concatenate(cols, axis=-1).reshape(B * H * W, 9 * C)


def vgg16_forward(params, log_mfb):
    """Pallas forward: log_mfb (B, H, W) f32 -> (B, num_classes) f32 log-probabilities."""
    B, H0, W0 = log_mfb.shape
    assert H0 % 32 == 0 and W0 % 32 == 0, "spatial size must survive five 2x2 maxpools"
    blocks = _block_structure()
    nconv = sum(len(b) for b in blocks)
    n_fc = len(params["fc_w"])

    # torch: x = (1 + log_mfb / 16).unsqueeze(1).expand(-1, 3, -1, -1)   (NCHW)
    x = (1.0 + log_mfb / 16.0).astype(jnp.bfloat16)
    x = jnp.broadcast_to(x[..., None], (B, H0, W0, 3))
    x = _im2col_3x3(x)                                    # (B*H*W, 27) bf16, ~110 KiB

    n_early = len(blocks[0]) + len(blocks[1])
    stream_ids = list(range(n_early, nconv))              # blocks 3-5: weights streamed by DMA
    stream_set = set(stream_ids)

    in_specs = [pl.BlockSpec(memory_space=pltpu.MemorySpace.VMEM)]
    operands = [x]
    for ci in range(nconv):
        space = pl.ANY if ci in stream_set else pltpu.MemorySpace.VMEM
        in_specs.append(pl.BlockSpec(memory_space=space))
        operands.append(params["conv_wd"][ci])
    for ci in range(nconv):
        in_specs.append(pl.BlockSpec(memory_space=pltpu.MemorySpace.VMEM))
        operands.append(params["conv_b"][ci])
    for w, b in zip(params["fc_w"], params["fc_b"]):
        in_specs += [pl.BlockSpec(memory_space=pltpu.MemorySpace.VMEM)] * 2
        operands += [w, b]

    # Scratch: single-buffered VMEM for streamed weights + per-block flat activations.
    scratch = [pltpu.VMEM(tuple(params["conv_wd"][ci].shape), jnp.bfloat16)
               for ci in stream_ids]
    scratch.append(pltpu.SemaphoreType.DMA((len(stream_ids),)))
    act_plan = []
    H, W = H0, W0
    for blk in blocks:
        N = B * H * W
        for j, (_, cout) in enumerate(blk):
            # Last conv of each block kept f32: it only feeds the strided-read maxpool.
            act_plan.append(((N, cout), jnp.float32 if j == len(blk) - 1 else jnp.bfloat16))
        cb = blk[-1][1]
        act_plan.append(((N // 2, cb), jnp.float32))      # horizontal-pool intermediate
        act_plan.append(((N // 4, cb), jnp.bfloat16))     # pooled output / next block input
        H, W = H // 2, W // 2
    scratch += [pltpu.VMEM(s, d) for s, d in act_plan]

    nclass = params["fc_w"][-1].shape[-1]
    out_shape = jax.ShapeDtypeStruct((B, nclass), jnp.float32)

    # VMEM budget: everything is single-buffered (no grid pipelining), so the working set
    # is operands + scratch, plus headroom for compiler temporaries.  Capped well below
    # v7x's 64 MiB physical VMEM (v5e/v6e have 128 MiB).
    resident = _padded_bytes(x.shape, x.dtype) + _padded_bytes(out_shape.shape, out_shape.dtype)
    for ci in range(nconv):
        if ci not in stream_set:
            resident += _padded_bytes(params["conv_wd"][ci].shape, jnp.bfloat16)
        resident += _padded_bytes(params["conv_b"][ci].shape, jnp.float32)
    for w, b in zip(params["fc_w"], params["fc_b"]):
        resident += _padded_bytes(w.shape, w.dtype) + _padded_bytes(b.shape, b.dtype)
    scratch_bytes = sum(_padded_bytes(params["conv_wd"][ci].shape, jnp.bfloat16)
                        for ci in stream_ids)
    scratch_bytes += sum(_padded_bytes(s, d) for s, d in act_plan)
    limit = min(52 * _MiB, resident + scratch_bytes + 12 * _MiB)

    kernel = _make_kernel(B, H0, W0, blocks, n_fc, stream_ids, _roll_shifts_like_jnp())
    return pl.pallas_call(
        kernel,
        out_shape=out_shape,
        in_specs=in_specs,
        out_specs=pl.BlockSpec(memory_space=pltpu.MemorySpace.VMEM),
        scratch_shapes=scratch,
        compiler_params=pltpu.CompilerParams(vmem_limit_bytes=limit),
    )(*operands)


# ----------------------------- parameters & XLA reference -------------------------------
def init_params(key, linear_layers=(64,), num_classes=3):
    # TODO(synk): the torch module loads pretrained conv layers via torch.load(features_path);
    # the standard VGG16 feature topology is rebuilt here with deterministic He init instead.
    blocks = _block_structure()
    conv_w, conv_wd, conv_b = [], [], []
    ci = 0
    for blk in blocks:
        for (cin, cout) in blk:
            key, k1, k2 = jax.random.split(key, 3)
            w = jax.random.normal(k1, (3, 3, cin, cout), jnp.float32) * jnp.sqrt(2.0 / (9 * cin))
            conv_w.append(w.astype(jnp.bfloat16))
            if ci == 0:
                wd = w.reshape(9 * cin, cout)              # (27, 64): host-side im2col K
            else:
                # dx-indexed, dy fused into K: wd[dx, dy*Cin + ci, co] = w[dy, dx, ci, co]
                wd = jnp.transpose(w, (1, 0, 2, 3)).reshape(3, 3 * cin, cout)
            conv_wd.append(wd.astype(jnp.bfloat16))
            conv_b.append(0.1 * jax.random.normal(k2, (1, cout), jnp.float32))
            ci += 1
    dims = [512] + list(linear_layers) + [num_classes]
    fc_w, fc_b = [], []
    for i in range(len(dims) - 1):
        key, k1, k2 = jax.random.split(key, 3)
        fc_w.append((jax.random.normal(k1, (dims[i], dims[i + 1]), jnp.float32)
                     * jnp.sqrt(2.0 / dims[i])).astype(jnp.bfloat16))
        fc_b.append(0.1 * jax.random.normal(k2, (1, dims[i + 1]), jnp.float32))
    return {"conv_w": conv_w, "conv_wd": conv_wd, "conv_b": conv_b,
            "fc_w": fc_w, "fc_b": fc_b}


def vgg16_reference(params, log_mfb):
    """Pure-JAX/XLA mirror of the Pallas forward (same bf16/f32 precision choices)."""
    blocks = _block_structure()
    B, H, W = log_mfb.shape
    a = jnp.broadcast_to(((1.0 + log_mfb / 16.0).astype(jnp.bfloat16))[..., None],
                         (B, H, W, 3))
    ci = 0
    for blk in blocks:
        a_f32 = None
        for _ in blk:
            w, b = params["conv_w"][ci], params["conv_b"][ci]
            ci += 1
            z = lax.conv_general_dilated(a, w, (1, 1), ((1, 1), (1, 1)),
                                         dimension_numbers=("NHWC", "HWIO", "NHWC"),
                                         preferred_element_type=jnp.float32)
            a_f32 = jnp.maximum(z + b.reshape(1, 1, 1, -1), 0.0)
            a = a_f32.astype(jnp.bfloat16)
        pooled = lax.reduce_window(a_f32, -jnp.inf, lax.max,
                                   (1, 2, 2, 1), (1, 2, 2, 1), "VALID")
        a = pooled.astype(jnp.bfloat16)
    h = jnp.mean(a.astype(jnp.float32), axis=(1, 2))
    for j, (w, b) in enumerate(zip(params["fc_w"], params["fc_b"])):
        h = jnp.dot(h.astype(jnp.bfloat16), w, preferred_element_type=jnp.float32) + b
        if j < len(params["fc_w"]) - 1:
            h = jnp.maximum(h, 0.0)
    return jax.nn.log_softmax(h, axis=1)


if __name__ == "__main__":
    _roll_shifts_like_jnp()      # warm the one-time roll-convention probe (runs on TPU)

    key = jax.random.PRNGKey(0)
    pkey, xkey = jax.random.split(key)
    params = init_params(pkey)

    # log_mfb: (batch, freq, time) — 32x32 is the smallest spatial size that survives
    # VGG16's five 2x2 maxpools (-> 1x1x512 before the spatial mean).
    log_mfb = jax.random.normal(xkey, (2, 32, 32), jnp.float32)

    fwd = jax.jit(lambda lm: vgg16_forward(params, lm))
    out = jax.block_until_ready(fwd(log_mfb))

    assert out.shape == (2, 3) and out.dtype == jnp.float32
    # log_softmax rows must exponentiate-sum to 1.
    assert bool(jnp.allclose(jnp.exp(out).sum(axis=1), 1.0, atol=1e-4))
    # Cross-check the fused Pallas kernel against a pure-XLA reference with the same
    # precision choices (bf16 matmul inputs, f32 accumulation).
    ref = jax.block_until_ready(vgg16_reference(params, log_mfb))
    assert bool(jnp.allclose(out, ref, atol=5e-2, rtol=5e-2)), (out, ref)

    print("KERNEL_OK")
</pallas_src>

<mosaic_0001>
module attributes {stable_mosaic.version = 11 : i64} {
  func.func @probe(%arg0: memref<8x128xf32, #tpu.memory_space<vmem>>, %arg1: memref<8x128xf32, #tpu.memory_space<vmem>>) attributes {dimension_semantics = [], scalar_prefetch = 0 : i64, scratch_operands = 0 : i64, tpu.core_type = #tpu.core_type<tc>} {
    %c0 = arith.constant 0 : index
    %c0_0 = arith.constant 0 : index
    %0 = vector.load %arg0[%c0, %c0_0] : memref<8x128xf32, #tpu.memory_space<vmem>>, vector<8x128xf32>
    %c1_i32 = arith.constant 1 : i32
    %1 = tpu.dynamic_rotate %0 by %c1_i32 dim 0 : vector<8x128xf32>, i32 -> vector<8x128xf32>
    %c0_1 = arith.constant 0 : index
    %c0_2 = arith.constant 0 : index
    %2 = vector.load %arg1[%c0_1, %c0_2] : memref<8x128xf32, #tpu.memory_space<vmem>>, vector<8x128xf32>
    tpu.vector_store %arg1[%c0_1, %c0_2], %1 {strides = array<i32>} : memref<8x128xf32, #tpu.memory_space<vmem>>, vector<8x128xf32>,
    return
  }
}

</mosaic_0001>

<llo_original>
// kernel: tpu_custom_call.1
$region0: #{tpu_custom_call.1}
  #allocation0 [shape = 'u32[]', space=smem, size = 0x4, offset = 0x4, fixed_abs, tag = 'smem constant byte address 0x4 - core index']
  #allocation1 [shape = 'u32[144,128]{1,0:T(1,128)}', space=vmem, size = 0x12000, scoped, tag = 'internal scratch']
  %s0 = inlined_call_operand.hbm [shape: f32[8,128], index: 0, kind: input, shape index: {}]
  %s1 = inlined_call_operand.hbm [shape: f32[8,128], index: 1, kind: output, shape index: {}]
  %s2 = sld [smem:[#allocation0]]
  $region18: #{tpu_custom_call.1} parent=0
    _
  %s4 = ssub.s32 1, %s2
  %s5 = scalar_select 0, %s4, %s2
  $region1: #{tpu_custom_call.1} parent=0
    #allocation2 [shape = 'u8[4096]{0}', space=vmem, size = 0x1000, scoped, tag = 'input window, operand 0, single buffered']
    #allocation3 [shape = 's32[1]{0}', space=sflag, size = 0x4, scoped, tag = 'scoped memory for tpu_custom_call.1']
    #allocation4 [shape = 's32[1]{0}', space=sflag, size = 0x4, scoped, tag = 'scoped memory for tpu_custom_call.1']
    #allocation5 [shape = 'u8[4096]{0}', space=vmem, size = 0x1000, scoped, tag = 'output window, operand 0, single buffered']
    %6 = vsyncpa [#allocation3], 0
    %7 = vsyncpa [#allocation4], 0
    // Predicated region
    $region2: #{tpu_custom_call.1} parent=1 // pred_check
      _
    $region3: #{tpu_custom_call.1} parent=1 // pred_check_branch
      %9 = sbr.rel (0) target = $region5
    $region4: #{tpu_custom_call.1} parent=1 // pred_region
      %s11 = ssub.s32 128, 128
      %12 = vsyncadd [#allocation3], %s11
      %s14 = sshll.u32 [#allocation2], 4
      %s15 = int_to_ptr.vmem [resolvable:$true] %s14
      %17 = dma.hbm_to_vmem [thread:$0]  %s0, 128, %s15, [#allocation3]
    $region5: #{tpu_custom_call.1} parent=1 // pred_fallthru
      _
    // Predicated region
    $region6: #{tpu_custom_call.1} parent=1 // pred_check
      _
    $region7: #{tpu_custom_call.1} parent=1 // pred_check_branch
      %19 = sbr.rel (0) target = $region9
    $region8: #{tpu_custom_call.1} parent=1 // pred_region
      %20 = dma.done [#allocation3], 128
    $region9: #{tpu_custom_call.1} parent=1 // pred_fallthru
      _
    %v21 = vld [vmem:[#allocation2] sm:$0xff]
    %v22 = vrot.slane %v21, 7
    %23 = vst [vmem:[#allocation5] sm:$0xff] %v22
    // Predicated region
    $region10: #{tpu_custom_call.1} parent=1 // pred_check
      _
    $region11: #{tpu_custom_call.1} parent=1 // pred_check_branch
      %25 = sbr.rel (0) target = $region13
    $region12: #{tpu_custom_call.1} parent=1 // pred_region
      %s27 = ssub.s32 128, 128
      %28 = vsyncadd [#allocation4], %s27
      %s30 = sshll.u32 [#allocation5], 4
      %s31 = int_to_ptr.vmem [resolvable:$true] %s30
      %33 = dma.vmem_to_hbm [thread:$0]  %s31, 128, %s1, [#allocation4]
    $region13: #{tpu_custom_call.1} parent=1 // pred_fallthru
      _
    // Predicated region
    $region14: #{tpu_custom_call.1} parent=1 // pred_check
      _
    $region15: #{tpu_custom_call.1} parent=1 // pred_check_branch
      %35 = sbr.rel (0) target = $region17
    $region16: #{tpu_custom_call.1} parent=1 // pred_region
      %36 = dma.done [#allocation4], 128
    $region17: #{tpu_custom_call.1} parent=1 // pred_fallthru
      _
    %37 = vsyncpa [#allocation3], 1
    %38 = vsyncpa [#allocation4], 1

</llo_original>
